<compile_context>
chip_gen: v7x
topology: tpu7x:2x2x1
jax: 0.10.0
libtpu: 0.0.40
codegen_flags: <defaults>
</compile_context>

<pallas_src>
import jax
import jax.numpy as jnp
from jax.experimental import pallas as pl
from jax.experimental.pallas import tpu as pltpu

# ---------------------------------------------------------------------------
# Model hyper-parameters (concrete BaseNet instantiation)
# ---------------------------------------------------------------------------
N_FFT = 32
IC = 8        # internal_channels
CIN = 2       # input_channels
EMB = 8       # embedding_dim
NCOND = 4     # control_input_dim
DIM_F = N_FFT // 2            # 16  (F after first_conv)
F_IN = DIM_F + 1              # 17  (input / output F)
F_DS = DIM_F // 2             # 8   (F after downsampling)
COLS_IN = F_IN * CIN          # 34  (packed input / output lane width, unpadded)
COLS_PAD = 64                 # lane-padded input width
W128 = DIM_F * IC             # 128 (packed internal lane width)
W64 = F_DS * IC               # 64
OUT_PAD = 128                 # lane-padded output width (unmasked stores)


# ---------------------------------------------------------------------------
# Fused Pallas kernel: whole BaseNet forward for one row tile per grid step
# ---------------------------------------------------------------------------
def _basenet_kernel(x_ref,                       # [TR, 64]  bf16 input rows
                    wf_ref, we_ref, wm_ref,      # first / encoder / (ds∘mid) weights
                    wdu_ref, wdk_ref,            # (us∘decoder-up) / decoder-skip weights
                    wl_ref,                      # last_conv weight (lane-padded)
                    b_ref,                       # [8,128] packed biases (f32)
                    fs_ref, ft_ref,              # per-row FiLM gamma / beta [TR,128]
                    o_ref):                      # [TR,128] f32 output
    bf16 = wf_ref.dtype
    bias = b_ref[...]                            # [8, 128] f32

    def mm(a, w_ref, b_row):
        return jnp.dot(a.astype(bf16), w_ref[...],
                       preferred_element_type=jnp.float32) + b_row

    x = x_ref[...]                                              # [TR, 64] bf16
    h = jnp.maximum(mm(x, wf_ref, bias[0]), 0.0)                # first_conv -> [TR,128]
    skip = jnp.maximum(mm(h, we_ref, bias[1]), 0.0)             # encoder    -> [TR,128]
    m = jnp.maximum(mm(skip, wm_ref, bias[2, :W64]), 0.0)       # ds∘mid     -> [TR, 64]

    # decoder: Conv1x1 over cat((upsample(m), skip)) == two matmuls summed,
    # with the upsample conv-transpose folded into the up-path weight.
    dec = (jnp.dot(m.astype(bf16), wdu_ref[...], preferred_element_type=jnp.float32)
           + jnp.dot(skip.astype(bf16), wdk_ref[...], preferred_element_type=jnp.float32)
           + bias[3])                                           # [TR,128]
    # FiLM (gamma*x + beta), then ReLU.
    dec = jnp.maximum(dec * fs_ref[...] + ft_ref[...], 0.0)

    y = mm(dec, wl_ref, bias[4])                                # last_conv -> [TR,128] (padded)
    o_ref[...] = jax.nn.sigmoid(y).astype(o_ref.dtype)


# ---------------------------------------------------------------------------
# Weight packing: fold BN, fuse linear-linear pairs, one matmul per layer
# ---------------------------------------------------------------------------
def _bn_fold(bn, eps=1e-5):
    s = bn["gamma"] * jax.lax.rsqrt(bn["var"] + eps)
    t = bn["beta"] - bn["mean"] * s
    return s, t


def _sel(n_in, n_out, pred):
    i = jnp.arange(n_in)[:, None]
    o = jnp.arange(n_out)[None, :]
    return pred(i, o).astype(jnp.float32)


def _pack_weights(params, wdtype=jnp.bfloat16):
    eye16 = jnp.eye(DIM_F, dtype=jnp.float32)
    eye8 = jnp.eye(F_DS, dtype=jnp.float32)

    # first_conv (1,2) + BN:  out[fo] = x[fo]@W0 + x[fo+1]@W1
    s, t = _bn_fold(params["first_bn"])
    w0 = params["first_w"][:, :, 0, 0].T * s[None, :]
    w1 = params["first_w"][:, :, 0, 1].T * s[None, :]
    Wfirst = (jnp.kron(_sel(F_IN, DIM_F, lambda i, o: i == o), w0)
              + jnp.kron(_sel(F_IN, DIM_F, lambda i, o: i == o + 1), w1))     # [34,128]
    Wfirst = jnp.pad(Wfirst, ((0, COLS_PAD - COLS_IN), (0, 0)))               # [64,128]
    Bfirst = jnp.tile(params["first_b"] * s + t, DIM_F)                       # [128]

    # encoder 1x1 + BN
    s, t = _bn_fold(params["enc_bn"])
    Wenc = jnp.kron(eye16, params["enc_w"][:, :, 0, 0].T * s[None, :])        # [128,128]
    Benc = jnp.tile(params["enc_b"] * s + t, DIM_F)

    # downsample (1,2) stride 2 fused with mid 1x1 + BN (no nonlinearity between them)
    Wds = (jnp.kron(_sel(DIM_F, F_DS, lambda i, o: i == 2 * o),
                    params["ds_w"][:, :, 0, 0].T)
           + jnp.kron(_sel(DIM_F, F_DS, lambda i, o: i == 2 * o + 1),
                      params["ds_w"][:, :, 0, 1].T))                          # [128,64]
    Bds = jnp.tile(params["ds_b"], F_DS)                                      # [64]
    s, t = _bn_fold(params["mid_bn"])
    Wmid = jnp.kron(eye8, params["mid_w"][:, :, 0, 0].T * s[None, :])         # [64,64]
    Bmid = jnp.tile(params["mid_b"] * s + t, F_DS)
    Wm = Wds @ Wmid                                                           # [128,64]
    Bm = Bds @ Wmid + Bmid                                                    # [64]

    # upsample ConvTranspose (1,2)/(1,2) fused with decoder up-path 1x1 + BN
    Wus = (jnp.kron(_sel(F_DS, DIM_F, lambda i, o: o == 2 * i),
                    params["us_w"][:, :, 0, 0])
           + jnp.kron(_sel(F_DS, DIM_F, lambda i, o: o == 2 * i + 1),
                      params["us_w"][:, :, 0, 1]))                            # [64,128]
    Bus = jnp.tile(params["us_b"], DIM_F)                                     # [128]
    s, t = _bn_fold(params["dec_bn"])
    Wdec_up = jnp.kron(eye16, params["dec_w"][:, :IC, 0, 0].T * s[None, :])   # [128,128]
    Wdec_sk = jnp.kron(eye16, params["dec_w"][:, IC:, 0, 0].T * s[None, :])   # [128,128]
    Bdec = jnp.tile(params["dec_b"] * s + t, DIM_F)
    Wdu = Wus @ Wdec_up                                                       # [64,128]
    Bdec_f = Bus @ Wdec_up + Bdec                                             # [128]

    # last_conv (1,2) pad (0,1): out[fo] = x[fo-1]@W0 + x[fo]@W1 ; lane-padded to 128 cols
    Wlast = (jnp.kron(_sel(DIM_F, F_IN, lambda i, o: o == i + 1),
                      params["last_w"][:, :, 0, 0].T)
             + jnp.kron(_sel(DIM_F, F_IN, lambda i, o: o == i),
                        params["last_w"][:, :, 0, 1].T))                      # [128,34]
    Wlast = jnp.pad(Wlast, ((0, 0), (0, OUT_PAD - COLS_IN)))                  # [128,128]
    Blast = jnp.pad(jnp.tile(params["last_b"], F_IN), (0, OUT_PAD - COLS_IN)) # [128]

    def pad128(v):
        return jnp.pad(v, (0, W128 - v.shape[0]))

    zero = jnp.zeros((W128,), jnp.float32)
    bias_pack = jnp.stack([Bfirst, Benc, pad128(Bm), Bdec_f, Blast,
                           zero, zero, zero]).astype(jnp.float32)             # [8,128]

    w = lambda a: a.astype(wdtype)
    return dict(wf=w(Wfirst), we=w(Wenc), wm=w(Wm), wdu=w(Wdu),
                wdk=w(Wdec_sk), wl=w(Wlast), bias=bias_pack)


# ---------------------------------------------------------------------------
# BaseNet parameters & forward
# ---------------------------------------------------------------------------
def init_params(key):
    ks = jax.random.split(key, 24)

    def w(k, shape, s=0.1):
        return jax.random.normal(k, shape, jnp.float32) * s

    def bn(k, c):
        k1, k2, k3, k4 = jax.random.split(k, 4)
        return dict(gamma=1.0 + 0.1 * jax.random.normal(k1, (c,), jnp.float32),
                    beta=0.1 * jax.random.normal(k2, (c,), jnp.float32),
                    mean=0.1 * jax.random.normal(k3, (c,), jnp.float32),
                    var=1.0 + 0.1 * jnp.abs(jax.random.normal(k4, (c,), jnp.float32)))

    return dict(
        embedding=w(ks[0], (NCOND, EMB), 1.0),
        first_w=w(ks[1], (IC, CIN, 1, 2)), first_b=w(ks[2], (IC,)), first_bn=bn(ks[3], IC),
        enc_w=w(ks[4], (IC, IC, 1, 1)), enc_b=w(ks[5], (IC,)), enc_bn=bn(ks[6], IC),
        ds_w=w(ks[7], (IC, IC, 1, 2)), ds_b=w(ks[8], (IC,)),
        mid_w=w(ks[9], (IC, IC, 1, 1)), mid_b=w(ks[10], (IC,)), mid_bn=bn(ks[11], IC),
        us_w=w(ks[12], (IC, IC, 1, 2)), us_b=w(ks[13], (IC,)),
        dec_w=w(ks[14], (IC, 2 * IC, 1, 1)), dec_b=w(ks[15], (IC,)), dec_bn=bn(ks[16], IC),
        film_wg=w(ks[17], (EMB, IC)), film_bg=jnp.zeros((IC,), jnp.float32),
        film_wb=w(ks[18], (EMB, IC)), film_bb=jnp.zeros((IC,), jnp.float32),
        last_w=w(ks[19], (CIN, IC, 1, 2)), last_b=jnp.zeros((CIN,), jnp.float32),
    )


def basenet_forward(params, input_spec, input_condition):
    # input_spec: NCHW [N, CIN, T, F_IN]; input_condition: int [N]
    N, _, T, _ = input_spec.shape
    assert T % 8 == 0, "time dim must be a multiple of 8 (sublane tiling)"
    R = N * T

    # Largest row tile (from a friendly list) that divides R: amortizes the ~0.35 µs
    # per-step pipeline overhead; a single grid step at small shapes.
    TR = next(t for t in (1024, 512, 256, 128, 64, 32, 16, 8) if R % t == 0)

    # NCHW -> rows=(n,t), lanes pack (f, c); lane-pad 34 -> 64 and ship as bf16.
    x2 = jnp.transpose(input_spec.astype(jnp.float32), (0, 2, 3, 1)).reshape(R, COLS_IN)
    x2 = jnp.pad(x2, ((0, 0), (0, COLS_PAD - COLS_IN))).astype(jnp.bfloat16)

    pw = _pack_weights(params)

    # FiLM (condition_to='decoder'): tiny matmuls stay in plain JAX; expanded per-row
    # so the kernel grid is batch-agnostic.  Convention: gamma*x + beta.
    emb = params["embedding"][input_condition]                      # [N, EMB]
    gamma = emb @ params["film_wg"] + params["film_bg"]             # [N, IC]
    beta = emb @ params["film_wb"] + params["film_bb"]              # [N, IC]
    film_s = jnp.repeat(jnp.tile(gamma, (1, DIM_F)), T, axis=0)     # [R, 128] f32
    film_t = jnp.repeat(jnp.tile(beta, (1, DIM_F)), T, axis=0)      # [R, 128] f32

    full = lambda a: pl.BlockSpec(a.shape, lambda i: (0, 0))        # VMEM-resident
    row_spec = lambda w: pl.BlockSpec((TR, w), lambda i: (i, 0))    # row-tile stream

    args = (x2, pw["wf"], pw["we"], pw["wm"], pw["wdu"], pw["wdk"], pw["wl"],
            pw["bias"], film_s, film_t)
    in_specs = ([row_spec(COLS_PAD)]
                + [full(a) for a in args[1:8]]
                + [row_spec(W128), row_spec(W128)])

    out = pl.pallas_call(
        _basenet_kernel,
        out_shape=jax.ShapeDtypeStruct((R, OUT_PAD), jnp.float32),
        grid=(R // TR,),
        in_specs=in_specs,
        out_specs=row_spec(OUT_PAD),
        compiler_params=pltpu.CompilerParams(dimension_semantics=("parallel",)),
    )(*args)

    # [R, 128] -> drop padding lanes -> NCHW [N, CIN, T, F_IN]
    y = out[:, :COLS_IN]
    return jnp.transpose(y.reshape(N, T, F_IN, CIN), (0, 3, 1, 2))

# TODO(synk): forward_multi_source / repeat_conditions and the 'one_hot_mode' /
# 'linear' embedding branches (and training-mode BatchNorm) are not exercised here;
# only BaseNet.forward with eval-mode BN is implemented.


if __name__ == "__main__":
    key = jax.random.PRNGKey(0)
    pk, xk, ck = jax.random.split(key, 3)
    params = init_params(pk)

    N, T = 2, 8
    input_spec = jax.random.normal(xk, (N, CIN, T, F_IN), jnp.float32)
    input_condition = jax.random.randint(ck, (N,), 0, NCOND)

    fwd = jax.jit(basenet_forward)
    out = jax.block_until_ready(fwd(params, input_spec, input_condition))

    assert out.shape == (N, CIN, T, F_IN), out.shape
    assert bool(jnp.all(jnp.isfinite(out)))
    assert bool(jnp.all((out >= 0.0) & (out <= 1.0)))   # sigmoid last activation
    print("KERNEL_OK")
</pallas_src>

<mosaic_0001>
module attributes {stable_mosaic.version = 11 : i64} {
  func.func @_basenet_kernel(%arg0: i32, %arg1: memref<16x64xbf16, #tpu.memory_space<vmem>>, %arg2: memref<64x128xbf16, #tpu.memory_space<vmem>>, %arg3: memref<128x128xbf16, #tpu.memory_space<vmem>>, %arg4: memref<128x64xbf16, #tpu.memory_space<vmem>>, %arg5: memref<64x128xbf16, #tpu.memory_space<vmem>>, %arg6: memref<128x128xbf16, #tpu.memory_space<vmem>>, %arg7: memref<128x128xbf16, #tpu.memory_space<vmem>>, %arg8: memref<8x128xf32, #tpu.memory_space<vmem>>, %arg9: memref<16x128xf32, #tpu.memory_space<vmem>>, %arg10: memref<16x128xf32, #tpu.memory_space<vmem>>, %arg11: memref<16x128xf32, #tpu.memory_space<vmem>>) attributes {dimension_semantics = [#tpu.dimension_semantics<parallel>], iteration_bounds = array<i64: 1>, scalar_prefetch = 0 : i64, scratch_operands = 0 : i64, tpu.core_type = #tpu.core_type<tc>, window_params = [{transform_indices = @transform_0, window_bounds = array<i64: 16, 64>}, {pipeline_mode = #tpu.pipeline_mode<synchronous>, transform_indices = @transform_1, window_bounds = array<i64: 64, 128>}, {pipeline_mode = #tpu.pipeline_mode<synchronous>, transform_indices = @transform_2, window_bounds = array<i64: 128, 128>}, {pipeline_mode = #tpu.pipeline_mode<synchronous>, transform_indices = @transform_3, window_bounds = array<i64: 128, 64>}, {pipeline_mode = #tpu.pipeline_mode<synchronous>, transform_indices = @transform_4, window_bounds = array<i64: 64, 128>}, {pipeline_mode = #tpu.pipeline_mode<synchronous>, transform_indices = @transform_5, window_bounds = array<i64: 128, 128>}, {pipeline_mode = #tpu.pipeline_mode<synchronous>, transform_indices = @transform_6, window_bounds = array<i64: 128, 128>}, {pipeline_mode = #tpu.pipeline_mode<synchronous>, transform_indices = @transform_7, window_bounds = array<i64: 8, 128>}, {transform_indices = @transform_8, window_bounds = array<i64: 16, 128>}, {transform_indices = @transform_9, window_bounds = array<i64: 16, 128>}, {transform_indices = @transform_10, window_bounds = array<i64: 16, 128>}]} {
    %c0 = arith.constant 0 : index
    %c0_0 = arith.constant 0 : index
    %0 = vector.load %arg8[%c0, %c0_0] : memref<8x128xf32, #tpu.memory_space<vmem>>, vector<8x128xf32>
    %c0_1 = arith.constant 0 : index
    %c0_2 = arith.constant 0 : index
    %1 = vector.load %arg1[%c0_1, %c0_2] : memref<16x64xbf16, #tpu.memory_space<vmem>>, vector<16x64xbf16>
    %2 = vector.extract_strided_slice %0 {offsets = [0, 0], sizes = [1, 128], strides = [1, 1]} : vector<8x128xf32> to vector<1x128xf32>
    %3 = vector.shape_cast %2 : vector<1x128xf32> to vector<128xf32>
    %c0_3 = arith.constant 0 : index
    %c0_4 = arith.constant 0 : index
    %4 = vector.load %arg2[%c0_3, %c0_4] : memref<64x128xbf16, #tpu.memory_space<vmem>>, vector<64x128xbf16>
    %cst = arith.constant dense<0.000000e+00> : vector<16x128xf32>
    %5 = tpu.matmul %1, %4, %cst {dimension_numbers = #tpu.dot_dimension_numbers<[1], [0], [0], [1], [0, 0, 1, 1], [], []>} : vector<16x64xbf16>, vector<64x128xbf16>, vector<16x128xf32> -> vector<16x128xf32>
    %6 = vector.shape_cast %3 : vector<128xf32> to vector<1x128xf32>
    %7 = vector.broadcast %6 : vector<1x128xf32> to vector<16x128xf32>
    %8 = arith.addf %5, %7 : vector<16x128xf32>
    %cst_5 = arith.constant 0.000000e+00 : f32
    %9 = vector.broadcast %cst_5 : f32 to vector<16x128xf32>
    %10 = arith.maximumf %8, %9 : vector<16x128xf32>
    %11 = vector.extract_strided_slice %0 {offsets = [1, 0], sizes = [1, 128], strides = [1, 1]} : vector<8x128xf32> to vector<1x128xf32>
    %12 = vector.shape_cast %11 : vector<1x128xf32> to vector<128xf32>
    %13 = arith.truncf %10 : vector<16x128xf32> to vector<16x128xbf16>
    %c0_6 = arith.constant 0 : index
    %c0_7 = arith.constant 0 : index
    %14 = vector.load %arg3[%c0_6, %c0_7] : memref<128x128xbf16, #tpu.memory_space<vmem>>, vector<128x128xbf16>
    %cst_8 = arith.constant dense<0.000000e+00> : vector<16x128xf32>
    %15 = tpu.matmul %13, %14, %cst_8 {dimension_numbers = #tpu.dot_dimension_numbers<[1], [0], [0], [1], [0, 0, 1, 1], [], []>} : vector<16x128xbf16>, vector<128x128xbf16>, vector<16x128xf32> -> vector<16x128xf32>
    %16 = vector.shape_cast %12 : vector<128xf32> to vector<1x128xf32>
    %17 = vector.broadcast %16 : vector<1x128xf32> to vector<16x128xf32>
    %18 = arith.addf %15, %17 : vector<16x128xf32>
    %cst_9 = arith.constant 0.000000e+00 : f32
    %19 = vector.broadcast %cst_9 : f32 to vector<16x128xf32>
    %20 = arith.maximumf %18, %19 : vector<16x128xf32>
    %21 = vector.extract_strided_slice %0 {offsets = [2, 0], sizes = [1, 64], strides = [1, 1]} : vector<8x128xf32> to vector<1x64xf32>
    %22 = vector.shape_cast %21 : vector<1x64xf32> to vector<64xf32>
    %23 = arith.truncf %20 : vector<16x128xf32> to vector<16x128xbf16>
    %c0_10 = arith.constant 0 : index
    %c0_11 = arith.constant 0 : index
    %24 = vector.load %arg4[%c0_10, %c0_11] : memref<128x64xbf16, #tpu.memory_space<vmem>>, vector<128x64xbf16>
    %cst_12 = arith.constant dense<0.000000e+00> : vector<16x64xf32>
    %25 = tpu.matmul %23, %24, %cst_12 {dimension_numbers = #tpu.dot_dimension_numbers<[1], [0], [0], [1], [0, 0, 1, 1], [], []>} : vector<16x128xbf16>, vector<128x64xbf16>, vector<16x64xf32> -> vector<16x64xf32>
    %26 = vector.shape_cast %22 : vector<64xf32> to vector<1x64xf32>
    %27 = vector.broadcast %26 : vector<1x64xf32> to vector<16x64xf32>
    %28 = arith.addf %25, %27 : vector<16x64xf32>
    %cst_13 = arith.constant 0.000000e+00 : f32
    %29 = vector.broadcast %cst_13 : f32 to vector<16x64xf32>
    %30 = arith.maximumf %28, %29 : vector<16x64xf32>
    %31 = arith.truncf %30 : vector<16x64xf32> to vector<16x64xbf16>
    %c0_14 = arith.constant 0 : index
    %c0_15 = arith.constant 0 : index
    %32 = vector.load %arg5[%c0_14, %c0_15] : memref<64x128xbf16, #tpu.memory_space<vmem>>, vector<64x128xbf16>
    %cst_16 = arith.constant dense<0.000000e+00> : vector<16x128xf32>
    %33 = tpu.matmul %31, %32, %cst_16 {dimension_numbers = #tpu.dot_dimension_numbers<[1], [0], [0], [1], [0, 0, 1, 1], [], []>} : vector<16x64xbf16>, vector<64x128xbf16>, vector<16x128xf32> -> vector<16x128xf32>
    %34 = arith.truncf %20 : vector<16x128xf32> to vector<16x128xbf16>
    %c0_17 = arith.constant 0 : index
    %c0_18 = arith.constant 0 : index
    %35 = vector.load %arg6[%c0_17, %c0_18] : memref<128x128xbf16, #tpu.memory_space<vmem>>, vector<128x128xbf16>
    %cst_19 = arith.constant dense<0.000000e+00> : vector<16x128xf32>
    %36 = tpu.matmul %34, %35, %cst_19 {dimension_numbers = #tpu.dot_dimension_numbers<[1], [0], [0], [1], [0, 0, 1, 1], [], []>} : vector<16x128xbf16>, vector<128x128xbf16>, vector<16x128xf32> -> vector<16x128xf32>
    %37 = arith.addf %33, %36 : vector<16x128xf32>
    %38 = vector.extract_strided_slice %0 {offsets = [3, 0], sizes = [1, 128], strides = [1, 1]} : vector<8x128xf32> to vector<1x128xf32>
    %39 = vector.shape_cast %38 : vector<1x128xf32> to vector<128xf32>
    %40 = vector.shape_cast %39 : vector<128xf32> to vector<1x128xf32>
    %41 = vector.broadcast %40 : vector<1x128xf32> to vector<16x128xf32>
    %42 = arith.addf %37, %41 : vector<16x128xf32>
    %c0_20 = arith.constant 0 : index
    %c0_21 = arith.constant 0 : index
    %43 = vector.load %arg9[%c0_20, %c0_21] : memref<16x128xf32, #tpu.memory_space<vmem>>, vector<16x128xf32>
    %44 = arith.mulf %42, %43 : vector<16x128xf32>
    %c0_22 = arith.constant 0 : index
    %c0_23 = arith.constant 0 : index
    %45 = vector.load %arg10[%c0_22, %c0_23] : memref<16x128xf32, #tpu.memory_space<vmem>>, vector<16x128xf32>
    %46 = arith.addf %44, %45 : vector<16x128xf32>
    %cst_24 = arith.constant 0.000000e+00 : f32
    %47 = vector.broadcast %cst_24 : f32 to vector<16x128xf32>
    %48 = arith.maximumf %46, %47 : vector<16x128xf32>
    %49 = vector.extract_strided_slice %0 {offsets = [4, 0], sizes = [1, 128], strides = [1, 1]} : vector<8x128xf32> to vector<1x128xf32>
    %50 = vector.shape_cast %49 : vector<1x128xf32> to vector<128xf32>
    %51 = arith.truncf %48 : vector<16x128xf32> to vector<16x128xbf16>
    %c0_25 = arith.constant 0 : index
    %c0_26 = arith.constant 0 : index
    %52 = vector.load %arg7[%c0_25, %c0_26] : memref<128x128xbf16, #tpu.memory_space<vmem>>, vector<128x128xbf16>
    %cst_27 = arith.constant dense<0.000000e+00> : vector<16x128xf32>
    %53 = tpu.matmul %51, %52, %cst_27 {dimension_numbers = #tpu.dot_dimension_numbers<[1], [0], [0], [1], [0, 0, 1, 1], [], []>} : vector<16x128xbf16>, vector<128x128xbf16>, vector<16x128xf32> -> vector<16x128xf32>
    %54 = vector.shape_cast %50 : vector<128xf32> to vector<1x128xf32>
    %55 = vector.broadcast %54 : vector<1x128xf32> to vector<16x128xf32>
    %56 = arith.addf %53, %55 : vector<16x128xf32>
    %57 = arith.negf %56 : vector<16x128xf32>
    %58 = math.exp %57 : vector<16x128xf32>
    %cst_28 = arith.constant 1.000000e+00 : f32
    %59 = vector.broadcast %cst_28 : f32 to vector<16x128xf32>
    %60 = arith.addf %59, %58 : vector<16x128xf32>
    %61 = arith.divf %59, %60 : vector<16x128xf32>
    %c0_29 = arith.constant 0 : index
    %c0_30 = arith.constant 0 : index
    %62 = vector.load %arg11[%c0_29, %c0_30] : memref<16x128xf32, #tpu.memory_space<vmem>>, vector<16x128xf32>
    tpu.vector_store %arg11[%c0_29, %c0_30], %61 {strides = array<i32>} : memref<16x128xf32, #tpu.memory_space<vmem>>, vector<16x128xf32>,
    return
  }
  func.func @transform_0(%arg0: i32) -> (i32, i32) {
    %c0_i32 = arith.constant 0 : i32
    %c0_i32_0 = arith.constant 0 : i32
    return %arg0, %c0_i32 : i32, i32
  }
  func.func @transform_1(%arg0: i32) -> (i32, i32) {
    %c0_i32 = arith.constant 0 : i32
    %c0_i32_0 = arith.constant 0 : i32
    %c0_i32_1 = arith.constant 0 : i32
    return %c0_i32, %c0_i32_0 : i32, i32
  }
  func.func @transform_2(%arg0: i32) -> (i32, i32) {
    %c0_i32 = arith.constant 0 : i32
    %c0_i32_0 = arith.constant 0 : i32
    %c0_i32_1 = arith.constant 0 : i32
    return %c0_i32, %c0_i32_0 : i32, i32
  }
  func.func @transform_3(%arg0: i32) -> (i32, i32) {
    %c0_i32 = arith.constant 0 : i32
    %c0_i32_0 = arith.constant 0 : i32
    %c0_i32_1 = arith.constant 0 : i32
    return %c0_i32, %c0_i32_0 : i32, i32
  }
  func.func @transform_4(%arg0: i32) -> (i32, i32) {
    %c0_i32 = arith.constant 0 : i32
    %c0_i32_0 = arith.constant 0 : i32
    %c0_i32_1 = arith.constant 0 : i32
    return %c0_i32, %c0_i32_0 : i32, i32
  }
  func.func @transform_5(%arg0: i32) -> (i32, i32) {
    %c0_i32 = arith.constant 0 : i32
    %c0_i32_0 = arith.constant 0 : i32
    %c0_i32_1 = arith.constant 0 : i32
    return %c0_i32, %c0_i32_0 : i32, i32
  }
  func.func @transform_6(%arg0: i32) -> (i32, i32) {
    %c0_i32 = arith.constant 0 : i32
    %c0_i32_0 = arith.constant 0 : i32
    %c0_i32_1 = arith.constant 0 : i32
    return %c0_i32, %c0_i32_0 : i32, i32
  }
  func.func @transform_7(%arg0: i32) -> (i32, i32) {
    %c0_i32 = arith.constant 0 : i32
    %c0_i32_0 = arith.constant 0 : i32
    %c0_i32_1 = arith.constant 0 : i32
    return %c0_i32, %c0_i32_0 : i32, i32
  }
  func.func @transform_8(%arg0: i32) -> (i32, i32) {
    %c0_i32 = arith.constant 0 : i32
    %c0_i32_0 = arith.constant 0 : i32
    return %arg0, %c0_i32 : i32, i32
  }
  func.func @transform_9(%arg0: i32) -> (i32, i32) {
    %c0_i32 = arith.constant 0 : i32
    %c0_i32_0 = arith.constant 0 : i32
    return %arg0, %c0_i32 : i32, i32
  }
  func.func @transform_10(%arg0: i32) -> (i32, i32) {
    %c0_i32 = arith.constant 0 : i32
    %c0_i32_0 = arith.constant 0 : i32
    return %arg0, %c0_i32 : i32, i32
  }
}

</mosaic_0001>

<llo_original>
// kernel: tile.48
$region0: #{tile.48}
  #allocation0 [shape = 's32[1]{0}', space=sflag, size = 0x4, scoped, tag = 'scoped memory for tile.48']
  %s0 = inlined_call_operand.vmem [shape: f32[8], index: 0, kind: input, shape index: {}]
  %s1 = inlined_call_operand.vmem [shape: f32[16,8], index: 1, kind: output, shape index: {}]
  // Predicated region
  $region2: #{tile.48} parent=0 // pred_check
    _
  $region3: #{tile.48} parent=0 // pred_check_branch
    %3 = sbr.rel (0) target = $region5
  $region4: #{tile.48} parent=0 // pred_region
    _
  $region5: #{tile.48} parent=0 // pred_fallthru
    _
  %v4 = vld [vmem:[%s0] ss:$0 sm:$0xff]
  %5 = vst [vmem:[%s1] sm:$0xff] %v4
  %s6 = scalar_lea.vmem %s1, 8
  %7 = vst [vmem:[%s6] sm:$0xff] %v4

// kernel: tile.78
$region0: #{tile.78}
  %s0 = inlined_call_operand.vmem [shape: f32[16,8], index: 0, kind: input, shape index: {}]
  %s1 = inlined_call_operand.vmem [shape: f32[1,128], index: 1, kind: output, shape index: {}]
  $region1: #{tile.78} parent=0
    #allocation0 [shape = 'u8[4096]{0}', space=vmem, size = 0x1000, scoped, tag = 'scoped mem for output reshape']
    %v2 = vld [vmem:[%s0] sm:$0x1]
    %vm3 = vcmask 64512
    %4 = vst.msk [vmem:[#allocation0] sm:$0x1] %vm3, %v2
    %s5 = scalar_lea.vmem %s0, 15
    %v6 = vld [vmem:[%s5] sm:$0x1]
    %7 = vrot.lane.b32.xlu0 %v6, 120
    %v8 = vpop.permute.xlu0 %7
    %vm9 = vcmask 1048512
    %10 = vst.msk [vmem:[#allocation0] sm:$0x1] %vm9, %v8
    %s11 = scalar_lea.vmem %s0, 14
    %v12 = vld [vmem:[%s11] sm:$0x1]
    %13 = vrot.lane.b32.xlu0 %v12, 112
    %v14 = vpop.permute.xlu0 %13
    %vm15 = vcmask 982912
    %16 = vst.msk [vmem:[#allocation0] sm:$0x1] %vm15, %v14
    %s17 = scalar_lea.vmem %s0, 13
    %v18 = vld [vmem:[%s17] sm:$0x1]
    %19 = vrot.lane.b32.xlu0 %v18, 104
    %v20 = vpop.permute.xlu0 %19
    %vm21 = vcmask 917312
    %22 = vst.msk [vmem:[#allocation0] sm:$0x1] %vm21, %v20
    %s23 = scalar_lea.vmem %s0, 12
    %v24 = vld [vmem:[%s23] sm:$0x1]
    %25 = vrot.lane.b32.xlu0 %v24, 96
    %v26 = vpop.permute.xlu0 %25
    %vm27 = vcmask 851712
    %28 = vst.msk [vmem:[#allocation0] sm:$0x1] %vm27, %v26
    %s29 = scalar_lea.vmem %s0, 11
    %v30 = vld [vmem:[%s29] sm:$0x1]
    %31 = vrot.lane.b32.xlu0 %v30, 88
    %v32 = vpop.permute.xlu0 %31
    %vm33 = vcmask 786112
    %34 = vst.msk [vmem:[#allocation0] sm:$0x1] %vm33, %v32
    %s35 = scalar_lea.vmem %s0, 10
    %v36 = vld [vmem:[%s35] sm:$0x1]
    %37 = vrot.lane.b32.xlu0 %v36, 80
    %v38 = vpop.permute.xlu0 %37
    %vm39 = vcmask 720512
    %40 = vst.msk [vmem:[#allocation0] sm:$0x1] %vm39, %v38
    %s41 = scalar_lea.vmem %s0, 9
    %v42 = vld [vmem:[%s41] sm:$0x1]
    %43 = vrot.lane.b32.xlu0 %v42, 72
    %v44 = vpop.permute.xlu0 %43
    %vm45 = vcmask 654912
    %46 = vst.msk [vmem:[#allocation0] sm:$0x1] %vm45, %v44
    %s47 = scalar_lea.vmem %s0, 8
    %v48 = vld [vmem:[%s47] sm:$0x1]
    %49 = vrot.lane.b32.xlu0 %v48, 64
    %v50 = vpop.permute.xlu0 %49
    %vm51 = vcmask 589312
    %52 = vst.msk [vmem:[#allocation0] sm:$0x1] %vm51, %v50
    %s53 = scalar_lea.vmem %s0, 7
    %v54 = vld [vmem:[%s53] sm:$0x1]
    %55 = vrot.lane.b32.xlu0 %v54, 56
    %v56 = vpop.permute.xlu0 %55
    %vm57 = vcmask 523712
    %58 = vst.msk [vmem:[#allocation0] sm:$0x1] %vm57, %v56
    %s59 = scalar_lea.vmem %s0, 6
    %v60 = vld [vmem:[%s59] sm:$0x1]
    %61 = vrot.lane.b32.xlu0 %v60, 48
    %v62 = vpop.permute.xlu0 %61
    %vm63 = vcmask 458112
    %64 = vst.msk [vmem:[#allocation0] sm:$0x1] %vm63, %v62
    %s65 = scalar_lea.vmem %s0, 5
    %v66 = vld [vmem:[%s65] sm:$0x1]
    %67 = vrot.lane.b32.xlu0 %v66, 40
    %v68 = vpop.permute.xlu0 %67
    %vm69 = vcmask 392512
    %70 = vst.msk [vmem:[#allocation0] sm:$0x1] %vm69, %v68
    %s71 = scalar_lea.vmem %s0, 4
    %v72 = vld [vmem:[%s71] sm:$0x1]
    %73 = vrot.lane.b32.xlu0 %v72, 32
    %v74 = vpop.permute.xlu0 %73
    %vm75 = vcmask 326912
    %76 = vst.msk [vmem:[#allocation0] sm:$0x1] %vm75, %v74
    %s77 = scalar_lea.vmem %s0, 3
    %v78 = vld [vmem:[%s77] sm:$0x1]
    %79 = vrot.lane.b32.xlu0 %v78, 24
    %v80 = vpop.permute.xlu0 %79
    %vm81 = vcmask 261312
    %82 = vst.msk [vmem:[#allocation0] sm:$0x1] %vm81, %v80
    %s83 = scalar_lea.vmem %s0, 2
    %v84 = vld [vmem:[%s83] sm:$0x1]
    %85 = vrot.lane.b32.xlu0 %v84, 16
    %v86 = vpop.permute.xlu0 %85
    %vm87 = vcmask 195712
    %88 = vst.msk [vmem:[#allocation0] sm:$0x1] %vm87, %v86
    %s89 = scalar_lea.vmem %s0, 1
    %v90 = vld [vmem:[%s89] sm:$0x1]
    %91 = vrot.lane.b32.xlu0 %v90, 8
    %v92 = vpop.permute.xlu0 %91
    %vm93 = vcmask 130112
    %94 = vst.msk [vmem:[#allocation0] sm:$0x1] %vm93, %v92
    %s96 = sshllo.u32 0, 1
    %v98 = vld [vmem:[#allocation0] sm:%s96]
    %s99 = sshllo.u32 0, 1
    %100 = vst [vmem:[%s1] sm:%s99] %v98

// kernel: tile.76
$region0: #{tile.76}
  #allocation0 [shape = 's32[1]{0}', space=sflag, size = 0x4, scoped, tag = 'scoped memory for tile.76']
  %s0 = inlined_call_operand.vmem [shape: f32[2], index: 0, kind: input, shape index: {}]
  %s1 = inlined_call_operand.vmem [shape: f32[17,2], index: 1, kind: output, shape index: {}]
  // Predicated region
  $region2: #{tile.76} parent=0 // pred_check
    _
  $region3: #{tile.76} parent=0 // pred_check_branch
    %3 = sbr.rel (0) target = $region5
  $region4: #{tile.76} parent=0 // pred_region
    _
  $region5: #{tile.76} parent=0 // pred_fallthru
    _
  %v4 = vld [vmem:[%s0] ss:$0 sm:$0xff]
  %5 = vst [vmem:[%s1] sm:$0xff] %v4
  %s6 = scalar_lea.vmem %s1, 8
  %7 = vst [vmem:[%s6] sm:$0xff] %v4
  %s8 = scalar_lea.vmem %s1, 16
  %9 = vst [vmem:[%s8] sm:$0xff] %v4

// kernel: tile.77
$region0: #{tile.77}
  %s0 = inlined_call_operand.vmem [shape: f32[17,2], index: 0, kind: input, shape index: {}]
  %s1 = inlined_call_operand.vmem [shape: f32[34], index: 1, kind: output, shape index: {}]
  $region1: #{tile.77} parent=0
    #allocation0 [shape = 'u8[4096]{0}', space=vmem, size = 0x1000, scoped, tag = 'scoped mem for output reshape']
    %v2 = vld [vmem:[%s0] sm:$0x1]
    %vm3 = vcmask 15360
    %4 = vst.msk [vmem:[#allocation0] sm:$0x1] %vm3, %v2
    %s5 = scalar_lea.vmem %s0, 16
    %v6 = vld [vmem:[%s5] sm:$0x1]
    %7 = vrot.lane.b32.xlu0 %v6, 32
    %v8 = vpop.permute.xlu0 %7
    %vm9 = vcmask 277760
    %10 = vst.msk [vmem:[#allocation0] sm:$0x1] %vm9, %v8
    %s11 = scalar_lea.vmem %s0, 15
    %v12 = vld [vmem:[%s11] sm:$0x1]
    %13 = vrot.lane.b32.xlu0 %v12, 30
    %v14 = vpop.permute.xlu0 %13
    %vm15 = vcmask 261360
    %16 = vst.msk [vmem:[#allocation0] sm:$0x1] %vm15, %v14
    %s17 = scalar_lea.vmem %s0, 14
    %v18 = vld [vmem:[%s17] sm:$0x1]
    %19 = vrot.lane.b32.xlu0 %v18, 28
    %v20 = vpop.permute.xlu0 %19
    %vm21 = vcmask 244960
    %22 = vst.msk [vmem:[#allocation0] sm:$0x1] %vm21, %v20
    %s23 = scalar_lea.vmem %s0, 13
    %v24 = vld [vmem:[%s23] sm:$0x1]
    %25 = vrot.lane.b32.xlu0 %v24, 26
    %v26 = vpop.permute.xlu0 %25
    %vm27 = vcmask 228560
    %28 = vst.msk [vmem:[#allocation0] sm:$0x1] %vm27, %v26
    %s29 = scalar_lea.vmem %s0, 12
    %v30 = vld [vmem:[%s29] sm:$0x1]
    %31 = vrot.lane.b32.xlu0 %v30, 24
    %v32 = vpop.permute.xlu0 %31
    %vm33 = vcmask 212160
    %34 = vst.msk [vmem:[#allocation0] sm:$0x1] %vm33, %v32
    %s35 = scalar_lea.vmem %s0, 11
    %v36 = vld [vmem:[%s35] sm:$0x1]
    %37 = vrot.lane.b32.xlu0 %v36, 22
    %v38 = vpop.permute.xlu0 %37
    %vm39 = vcmask 195760
    %40 = vst.msk [vmem:[#allocation0] sm:$0x1] %vm39, %v38
    %s41 = scalar_lea.vmem %s0, 10
    %v42 = vld [vmem:[%s41] sm:$0x1]
    %43 = vrot.lane.b32.xlu0 %v42, 20
    %v44 = vpop.permute.xlu0 %43
    %vm45 = vcmask 179360
    %46 = vst.msk [vmem:[#allocation0] sm:$0x1] %vm45, %v44
    %s47 = scalar_lea.vmem %s0, 9
    %v48 = vld [vmem:[%s47] sm:$0x1]
    %49 = vrot.lane.b32.xlu0 %v48, 18
    %v50 = vpop.permute.xlu0 %49
    %vm51 = vcmask 162960
    %52 = vst.msk [vmem:[#allocation0] sm:$0x1] %vm51, %v50
    %s53 = scalar_lea.vmem %s0, 8
    %v54 = vld [vmem:[%s53] sm:$0x1]
    %55 = vrot.lane.b32.xlu0 %v54, 16
    %v56 = vpop.permute.xlu0 %55
    %vm57 = vcmask 146560
    %58 = vst.msk [vmem:[#allocation0] sm:$0x1] %vm57, %v56
    %s59 = scalar_lea.vmem %s0, 7
    %v60 = vld [vmem:[%s59] sm:$0x1]
    %61 = vrot.lane.b32.xlu0 %v60, 14
    %v62 = vpop.permute.xlu0 %61
    %vm63 = vcmask 130160
    %64 = vst.msk [vmem:[#allocation0] sm:$0x1] %vm63, %v62
    %s65 = scalar_lea.vmem %s0, 6
    %v66 = vld [vmem:[%s65] sm:$0x1]
    %67 = vrot.lane.b32.xlu0 %v66, 12
    %v68 = vpop.permute.xlu0 %67
    %vm69 = vcmask 113760
    %70 = vst.msk [vmem:[#allocation0] sm:$0x1] %vm69, %v68
    %s71 = scalar_lea.vmem %s0, 5
    %v72 = vld [vmem:[%s71] sm:$0x1]
    %73 = vrot.lane.b32.xlu0 %v72, 10
    %v74 = vpop.permute.xlu0 %73
    %vm75 = vcmask 97360
    %76 = vst.msk [vmem:[#allocation0] sm:$0x1] %vm75, %v74
    %s77 = scalar_lea.vmem %s0, 4
    %v78 = vld [vmem:[%s77] sm:$0x1]
    %79 = vrot.lane.b32.xlu0 %v78, 8
    %v80 = vpop.permute.xlu0 %79
    %vm81 = vcmask 80960
    %82 = vst.msk [vmem:[#allocation0] sm:$0x1] %vm81, %v80
    %s83 = scalar_lea.vmem %s0, 3
    %v84 = vld [vmem:[%s83] sm:$0x1]
    %85 = vrot.lane.b32.xlu0 %v84, 6
    %v86 = vpop.permute.xlu0 %85
    %vm87 = vcmask 64560
    %88 = vst.msk [vmem:[#allocation0] sm:$0x1] %vm87, %v86
    %s89 = scalar_lea.vmem %s0, 2
    %v90 = vld [vmem:[%s89] sm:$0x1]
    %91 = vrot.lane.b32.xlu0 %v90, 4
    %v92 = vpop.permute.xlu0 %91
    %vm93 = vcmask 48160
    %94 = vst.msk [vmem:[#allocation0] sm:$0x1] %vm93, %v92
    %s95 = scalar_lea.vmem %s0, 1
    %v96 = vld [vmem:[%s95] sm:$0x1]
    %97 = vrot.lane.b32.xlu0 %v96, 2
    %v98 = vpop.permute.xlu0 %97
    %vm99 = vcmask 31760
    %100 = vst.msk [vmem:[#allocation0] sm:$0x1] %vm99, %v98
    %s102 = sshllo.u32 0, 1
    %v104 = vld [vmem:[#allocation0] sm:%s102]
    %s105 = sshllo.u32 0, 1
    %106 = vst [vmem:[%s1] sm:%s105] %v104

// kernel: tile.56
$region0: #{tile.56}
  #allocation0 [shape = 's32[1]{0}', space=sflag, size = 0x4, scoped, tag = 'scoped memory for tile.56']
  %s0 = inlined_call_operand.vmem [shape: f32[8], index: 0, kind: input, shape index: {}]
  %s1 = inlined_call_operand.vmem [shape: f32[8,8], index: 1, kind: output, shape index: {}]
  // Predicated region
  $region2: #{tile.56} parent=0 // pred_check
    _
  $region3: #{tile.56} parent=0 // pred_check_branch
    %3 = sbr.rel (0) target = $region5
  $region4: #{tile.56} parent=0 // pred_region
    _
  $region5: #{tile.56} parent=0 // pred_fallthru
    _
  %v4 = vld [vmem:[%s0] ss:$0 sm:$0xff]
  %5 = vst [vmem:[%s1] sm:$0xff] %v4

// kernel: tile.57
$region0: #{tile.57}
  %s0 = inlined_call_operand.vmem [shape: f32[8,8], index: 0, kind: input, shape index: {}]
  %s1 = inlined_call_operand.vmem [shape: f32[64], index: 1, kind: output, shape index: {}]
  $region1: #{tile.57} parent=0
    #allocation0 [shape = 'u8[4096]{0}', space=vmem, size = 0x1000, scoped, tag = 'scoped mem for output reshape']
    %v2 = vld [vmem:[%s0] sm:$0x1]
    %vm3 = vcmask 64512
    %4 = vst.msk [vmem:[#allocation0] sm:$0x1] %vm3, %v2
    %s5 = scalar_lea.vmem %s0, 7
    %v6 = vld [vmem:[%s5] sm:$0x1]
    %7 = vrot.lane.b32.xlu0 %v6, 56
    %v8 = vpop.permute.xlu0 %7
    %vm9 = vcmask 523712
    %10 = vst.msk [vmem:[#allocation0] sm:$0x1] %vm9, %v8
    %s11 = scalar_lea.vmem %s0, 6
    %v12 = vld [vmem:[%s11] sm:$0x1]
    %13 = vrot.lane.b32.xlu0 %v12, 48
    %v14 = vpop.permute.xlu0 %13
    %vm15 = vcmask 458112
    %16 = vst.msk [vmem:[#allocation0] sm:$0x1] %vm15, %v14
    %s17 = scalar_lea.vmem %s0, 5
    %v18 = vld [vmem:[%s17] sm:$0x1]
    %19 = vrot.lane.b32.xlu0 %v18, 40
    %v20 = vpop.permute.xlu0 %19
    %vm21 = vcmask 392512
    %22 = vst.msk [vmem:[#allocation0] sm:$0x1] %vm21, %v20
    %s23 = scalar_lea.vmem %s0, 4
    %v24 = vld [vmem:[%s23] sm:$0x1]
    %25 = vrot.lane.b32.xlu0 %v24, 32
    %v26 = vpop.permute.xlu0 %25
    %vm27 = vcmask 326912
    %28 = vst.msk [vmem:[#allocation0] sm:$0x1] %vm27, %v26
    %s29 = scalar_lea.vmem %s0, 3
    %v30 = vld [vmem:[%s29] sm:$0x1]
    %31 = vrot.lane.b32.xlu0 %v30, 24
    %v32 = vpop.permute.xlu0 %31
    %vm33 = vcmask 261312
    %34 = vst.msk [vmem:[#allocation0] sm:$0x1] %vm33, %v32
    %s35 = scalar_lea.vmem %s0, 2
    %v36 = vld [vmem:[%s35] sm:$0x1]
    %37 = vrot.lane.b32.xlu0 %v36, 16
    %v38 = vpop.permute.xlu0 %37
    %vm39 = vcmask 195712
    %40 = vst.msk [vmem:[#allocation0] sm:$0x1] %vm39, %v38
    %s41 = scalar_lea.vmem %s0, 1
    %v42 = vld [vmem:[%s41] sm:$0x1]
    %43 = vrot.lane.b32.xlu0 %v42, 8
    %v44 = vpop.permute.xlu0 %43
    %vm45 = vcmask 130112
    %46 = vst.msk [vmem:[#allocation0] sm:$0x1] %vm45, %v44
    %s48 = sshllo.u32 0, 1
    %v50 = vld [vmem:[#allocation0] sm:%s48]
    %s51 = sshllo.u32 0, 1
    %52 = vst [vmem:[%s1] sm:%s51] %v50

// kernel: tile.67
$region0: #{tile.67}
  %s0 = inlined_call_operand.vmem [shape: f32[16,8], index: 0, kind: input, shape index: {}]
  %s1 = inlined_call_operand.vmem [shape: f32[128], index: 1, kind: output, shape index: {}]
  $region1: #{tile.67} parent=0
    #allocation0 [shape = 'u8[4096]{0}', space=vmem, size = 0x1000, scoped, tag = 'scoped mem for output reshape']
    %v2 = vld [vmem:[%s0] sm:$0x1]
    %vm3 = vcmask 64512
    %4 = vst.msk [vmem:[#allocation0] sm:$0x1] %vm3, %v2
    %s5 = scalar_lea.vmem %s0, 15
    %v6 = vld [vmem:[%s5] sm:$0x1]
    %7 = vrot.lane.b32.xlu0 %v6, 120
    %v8 = vpop.permute.xlu0 %7
    %vm9 = vcmask 1048512
    %10 = vst.msk [vmem:[#allocation0] sm:$0x1] %vm9, %v8
    %s11 = scalar_lea.vmem %s0, 14
    %v12 = vld [vmem:[%s11] sm:$0x1]
    %13 = vrot.lane.b32.xlu0 %v12, 112
    %v14 = vpop.permute.xlu0 %13
    %vm15 = vcmask 982912
    %16 = vst.msk [vmem:[#allocation0] sm:$0x1] %vm15, %v14
    %s17 = scalar_lea.vmem %s0, 13
    %v18 = vld [vmem:[%s17] sm:$0x1]
    %19 = vrot.lane.b32.xlu0 %v18, 104
    %v20 = vpop.permute.xlu0 %19
    %vm21 = vcmask 917312
    %22 = vst.msk [vmem:[#allocation0] sm:$0x1] %vm21, %v20
    %s23 = scalar_lea.vmem %s0, 12
    %v24 = vld [vmem:[%s23] sm:$0x1]
    %25 = vrot.lane.b32.xlu0 %v24, 96
    %v26 = vpop.permute.xlu0 %25
    %vm27 = vcmask 851712
    %28 = vst.msk [vmem:[#allocation0] sm:$0x1] %vm27, %v26
    %s29 = scalar_lea.vmem %s0, 11
    %v30 = vld [vmem:[%s29] sm:$0x1]
    %31 = vrot.lane.b32.xlu0 %v30, 88
    %v32 = vpop.permute.xlu0 %31
    %vm33 = vcmask 786112
    %34 = vst.msk [vmem:[#allocation0] sm:$0x1] %vm33, %v32
    %s35 = scalar_lea.vmem %s0, 10
    %v36 = vld [vmem:[%s35] sm:$0x1]
    %37 = vrot.lane.b32.xlu0 %v36, 80
    %v38 = vpop.permute.xlu0 %37
    %vm39 = vcmask 720512
    %40 = vst.msk [vmem:[#allocation0] sm:$0x1] %vm39, %v38
    %s41 = scalar_lea.vmem %s0, 9
    %v42 = vld [vmem:[%s41] sm:$0x1]
    %43 = vrot.lane.b32.xlu0 %v42, 72
    %v44 = vpop.permute.xlu0 %43
    %vm45 = vcmask 654912
    %46 = vst.msk [vmem:[#allocation0] sm:$0x1] %vm45, %v44
    %s47 = scalar_lea.vmem %s0, 8
    %v48 = vld [vmem:[%s47] sm:$0x1]
    %49 = vrot.lane.b32.xlu0 %v48, 64
    %v50 = vpop.permute.xlu0 %49
    %vm51 = vcmask 589312
    %52 = vst.msk [vmem:[#allocation0] sm:$0x1] %vm51, %v50
    %s53 = scalar_lea.vmem %s0, 7
    %v54 = vld [vmem:[%s53] sm:$0x1]
    %55 = vrot.lane.b32.xlu0 %v54, 56
    %v56 = vpop.permute.xlu0 %55
    %vm57 = vcmask 523712
    %58 = vst.msk [vmem:[#allocation0] sm:$0x1] %vm57, %v56
    %s59 = scalar_lea.vmem %s0, 6
    %v60 = vld [vmem:[%s59] sm:$0x1]
    %61 = vrot.lane.b32.xlu0 %v60, 48
    %v62 = vpop.permute.xlu0 %61
    %vm63 = vcmask 458112
    %64 = vst.msk [vmem:[#allocation0] sm:$0x1] %vm63, %v62
    %s65 = scalar_lea.vmem %s0, 5
    %v66 = vld [vmem:[%s65] sm:$0x1]
    %67 = vrot.lane.b32.xlu0 %v66, 40
    %v68 = vpop.permute.xlu0 %67
    %vm69 = vcmask 392512
    %70 = vst.msk [vmem:[#allocation0] sm:$0x1] %vm69, %v68
    %s71 = scalar_lea.vmem %s0, 4
    %v72 = vld [vmem:[%s71] sm:$0x1]
    %73 = vrot.lane.b32.xlu0 %v72, 32
    %v74 = vpop.permute.xlu0 %73
    %vm75 = vcmask 326912
    %76 = vst.msk [vmem:[#allocation0] sm:$0x1] %vm75, %v74
    %s77 = scalar_lea.vmem %s0, 3
    %v78 = vld [vmem:[%s77] sm:$0x1]
    %79 = vrot.lane.b32.xlu0 %v78, 24
    %v80 = vpop.permute.xlu0 %79
    %vm81 = vcmask 261312
    %82 = vst.msk [vmem:[#allocation0] sm:$0x1] %vm81, %v80
    %s83 = scalar_lea.vmem %s0, 2
    %v84 = vld [vmem:[%s83] sm:$0x1]
    %85 = vrot.lane.b32.xlu0 %v84, 16
    %v86 = vpop.permute.xlu0 %85
    %vm87 = vcmask 195712
    %88 = vst.msk [vmem:[#allocation0] sm:$0x1] %vm87, %v86
    %s89 = scalar_lea.vmem %s0, 1
    %v90 = vld [vmem:[%s89] sm:$0x1]
    %91 = vrot.lane.b32.xlu0 %v90, 8
    %v92 = vpop.permute.xlu0 %91
    %vm93 = vcmask 130112
    %94 = vst.msk [vmem:[#allocation0] sm:$0x1] %vm93, %v92
    %s96 = sshllo.u32 0, 1
    %v98 = vld [vmem:[#allocation0] sm:%s96]
    %s99 = sshllo.u32 0, 1
    %100 = vst [vmem:[%s1] sm:%s99] %v98

// kernel: tile.89
$region0: #{tile.89}
  %s0 = inlined_call_operand.vmem [shape: f32[2,16,8], index: 0, kind: input, shape index: {}]
  %s1 = inlined_call_operand.vmem [shape: f32[2,128], index: 1, kind: output, shape index: {}]
  $region1: #{tile.89} parent=0
    #allocation0 [shape = 'u8[4096]{0}', space=vmem, size = 0x1000, scoped, tag = 'scoped mem for output reshape']
    %s2 = smov 3
    %v3 = vld [vmem:[%s0] ss:$16 sm:%s2]
    %vm4 = vcmask 64512
    %5 = vst.msk [vmem:[#allocation0] sm:$0x3] %vm4, %v3
    %s6 = scalar_lea.vmem %s0, 15
    %s7 = smov 3
    %v8 = vld [vmem:[%s6] ss:$16 sm:%s7]
    %9 = vrot.lane.b32.xlu0 %v8, 120
    %v10 = vpop.permute.xlu0 %9
    %vm11 = vcmask 1048512
    %12 = vst.msk [vmem:[#allocation0] sm:$0x3] %vm11, %v10
    %s13 = scalar_lea.vmem %s0, 14
    %s14 = smov 3
    %v15 = vld [vmem:[%s13] ss:$16 sm:%s14]
    %16 = vrot.lane.b32.xlu0 %v15, 112
    %v17 = vpop.permute.xlu0 %16
    %vm18 = vcmask 982912
    %19 = vst.msk [vmem:[#allocation0] sm:$0x3] %vm18, %v17
    %s20 = scalar_lea.vmem %s0, 13
    %s21 = smov 3
    %v22 = vld [vmem:[%s20] ss:$16 sm:%s21]
    %23 = vrot.lane.b32.xlu0 %v22, 104
    %v24 = vpop.permute.xlu0 %23
    %vm25 = vcmask 917312
    %26 = vst.msk [vmem:[#allocation0] sm:$0x3] %vm25, %v24
    %s27 = scalar_lea.vmem %s0, 12
    %s28 = smov 3
    %v29 = vld [vmem:[%s27] ss:$16 sm:%s28]
    %30 = vrot.lane.b32.xlu0 %v29, 96
    %v31 = vpop.permute.xlu0 %30
    %vm32 = vcmask 851712
    %33 = vst.msk [vmem:[#allocation0] sm:$0x3] %vm32, %v31
    %s34 = scalar_lea.vmem %s0, 11
    %s35 = smov 3
    %v36 = vld [vmem:[%s34] ss:$16 sm:%s35]
    %37 = vrot.lane.b32.xlu0 %v36, 88
    %v38 = vpop.permute.xlu0 %37
    %vm39 = vcmask 786112
    %40 = vst.msk [vmem:[#allocation0] sm:$0x3] %vm39, %v38
    %s41 = scalar_lea.vmem %s0, 10
    %s42 = smov 3
    %v43 = vld [vmem:[%s41] ss:$16 sm:%s42]
    %44 = vrot.lane.b32.xlu0 %v43, 80
    %v45 = vpop.permute.xlu0 %44
    %vm46 = vcmask 720512
    %47 = vst.msk [vmem:[#allocation0] sm:$0x3] %vm46, %v45
    %s48 = scalar_lea.vmem %s0, 9
    %s49 = smov 3
    %v50 = vld [vmem:[%s48] ss:$16 sm:%s49]
    %51 = vrot.lane.b32.xlu0 %v50, 72
    %v52 = vpop.permute.xlu0 %51
    %vm53 = vcmask 654912
    %54 = vst.msk [vmem:[#allocation0] sm:$0x3] %vm53, %v52
    %s55 = scalar_lea.vmem %s0, 8
    %s56 = smov 3
    %v57 = vld [vmem:[%s55] ss:$16 sm:%s56]
    %58 = vrot.lane.b32.xlu0 %v57, 64
    %v59 = vpop.permute.xlu0 %58
    %vm60 = vcmask 589312
    %61 = vst.msk [vmem:[#allocation0] sm:$0x3] %vm60, %v59
    %s62 = scalar_lea.vmem %s0, 7
    %s63 = smov 3
    %v64 = vld [vmem:[%s62] ss:$16 sm:%s63]
    %65 = vrot.lane.b32.xlu0 %v64, 56
    %v66 = vpop.permute.xlu0 %65
    %vm67 = vcmask 523712
    %68 = vst.msk [vmem:[#allocation0] sm:$0x3] %vm67, %v66
    %s69 = scalar_lea.vmem %s0, 6
    %s70 = smov 3
    %v71 = vld [vmem:[%s69] ss:$16 sm:%s70]
    %72 = vrot.lane.b32.xlu0 %v71, 48
    %v73 = vpop.permute.xlu0 %72
    %vm74 = vcmask 458112
    %75 = vst.msk [vmem:[#allocation0] sm:$0x3] %vm74, %v73
    %s76 = scalar_lea.vmem %s0, 5
    %s77 = smov 3
    %v78 = vld [vmem:[%s76] ss:$16 sm:%s77]
    %79 = vrot.lane.b32.xlu0 %v78, 40
    %v80 = vpop.permute.xlu0 %79
    %vm81 = vcmask 392512
    %82 = vst.msk [vmem:[#allocation0] sm:$0x3] %vm81, %v80
    %s83 = scalar_lea.vmem %s0, 4
    %s84 = smov 3
    %v85 = vld [vmem:[%s83] ss:$16 sm:%s84]
    %86 = vrot.lane.b32.xlu0 %v85, 32
    %v87 = vpop.permute.xlu0 %86
    %vm88 = vcmask 326912
    %89 = vst.msk [vmem:[#allocation0] sm:$0x3] %vm88, %v87
    %s90 = scalar_lea.vmem %s0, 3
    %s91 = smov 3
    %v92 = vld [vmem:[%s90] ss:$16 sm:%s91]
    %93 = vrot.lane.b32.xlu0 %v92, 24
    %v94 = vpop.permute.xlu0 %93
    %vm95 = vcmask 261312
    %96 = vst.msk [vmem:[#allocation0] sm:$0x3] %vm95, %v94
    %s97 = scalar_lea.vmem %s0, 2
    %s98 = smov 3
    %v99 = vld [vmem:[%s97] ss:$16 sm:%s98]
    %100 = vrot.lane.b32.xlu0 %v99, 16
    %v101 = vpop.permute.xlu0 %100
    %vm102 = vcmask 195712
    %103 = vst.msk [vmem:[#allocation0] sm:$0x3] %vm102, %v101
    %s104 = scalar_lea.vmem %s0, 1
    %s105 = smov 3
    %v106 = vld [vmem:[%s104] ss:$16 sm:%s105]
    %107 = vrot.lane.b32.xlu0 %v106, 8
    %v108 = vpop.permute.xlu0 %107
    %vm109 = vcmask 130112
    %110 = vst.msk [vmem:[#allocation0] sm:$0x3] %vm109, %v108
    %s112 = sshllo.u32 0, 2
    %v114 = vld [vmem:[#allocation0] sm:%s112]
    %s115 = sshllo.u32 0, 2
    %116 = vst [vmem:[%s1] sm:%s115] %v114

// kernel: basenet_forward.1
$region0: #{basenet_forward.1}
  #allocation0 [shape = 'u32[]', space=smem, size = 0x4, offset = 0x4, fixed_abs, tag = 'smem constant byte address 0x4 - core index']
  #allocation1 [shape = 'u32[144,128]{1,0:T(1,128)}', space=vmem, size = 0x12000, scoped, tag = 'internal scratch']
  %s0 = inlined_call_operand.vmem [shape: bf16[16,64], index: 0, kind: input, shape index: {}]
  %s1 = inlined_call_operand.vmem [shape: bf16[64,128], index: 1, kind: input, shape index: {}]
  %s2 = inlined_call_operand.vmem [shape: bf16[128,128], index: 2, kind: input, shape index: {}]
  %s3 = inlined_call_operand.vmem [shape: bf16[128,64], index: 3, kind: input, shape index: {}]
  %s4 = inlined_call_operand.vmem [shape: bf16[64,128], index: 4, kind: input, shape index: {}]
  %s5 = inlined_call_operand.vmem [shape: bf16[128,128], index: 5, kind: input, shape index: {}]
  %s6 = inlined_call_operand.vmem [shape: bf16[128,128], index: 6, kind: input, shape index: {}]
  %s7 = inlined_call_operand.vmem [shape: f32[8,128], index: 7, kind: input, shape index: {}]
  %s8 = inlined_call_operand.vmem [shape: f32[16,128], index: 8, kind: input, shape index: {}]
  %s9 = inlined_call_operand.vmem [shape: f32[16,128], index: 9, kind: input, shape index: {}]
  %s10 = inlined_call_operand.vmem [shape: f32[16,128], index: 10, kind: output, shape index: {}]
  %s11 = sld [smem:[#allocation0]]
  $region50: #{basenet_forward.1} parent=0
    _
  %s13 = ssub.s32 1, %s11
  %s14 = scalar_select 0, %s13, %s11
  // Predicated region
  $region2: #{basenet_forward.1} parent=0 // pred_check
    _
  $region3: #{basenet_forward.1} parent=0 // pred_check_branch
    %16 = sbr.rel (0) target = $region5
  $region4: #{basenet_forward.1} parent=0 // pred_region
    _
  $region5: #{basenet_forward.1} parent=0 // pred_fallthru
    _
  // Predicated region
  $region6: #{basenet_forward.1} parent=0 // pred_check
    _
  $region7: #{basenet_forward.1} parent=0 // pred_check_branch
    %18 = sbr.rel (0) target = $region9
  $region8: #{basenet_forward.1} parent=0 // pred_region
    _
  $region9: #{basenet_forward.1} parent=0 // pred_fallthru
    _
  // Predicated region
  $region10: #{basenet_forward.1} parent=0 // pred_check
    _
  $region11: #{basenet_forward.1} parent=0 // pred_check_branch
    %20 = sbr.rel (0) target = $region13
  $region12: #{basenet_forward.1} parent=0 // pred_region
    _
  $region13: #{basenet_forward.1} parent=0 // pred_fallthru
    _
  // Predicated region
  $region14: #{basenet_forward.1} parent=0 // pred_check
    _
  $region15: #{basenet_forward.1} parent=0 // pred_check_branch
    %22 = sbr.rel (0) target = $region17
  $region16: #{basenet_forward.1} parent=0 // pred_region
    _
  $region17: #{basenet_forward.1} parent=0 // pred_fallthru
    _
  // Predicated region
  $region18: #{basenet_forward.1} parent=0 // pred_check
    _
  $region19: #{basenet_forward.1} parent=0 // pred_check_branch
    %24 = sbr.rel (0) target = $region21
  $region20: #{basenet_forward.1} parent=0 // pred_region
    _
  $region21: #{basenet_forward.1} parent=0 // pred_fallthru
    _
  // Predicated region
  $region22: #{basenet_forward.1} parent=0 // pred_check
    _
  $region23: #{basenet_forward.1} parent=0 // pred_check_branch
    %26 = sbr.rel (0) target = $region25
  $region24: #{basenet_forward.1} parent=0 // pred_region
    _
  $region25: #{basenet_forward.1} parent=0 // pred_fallthru
    _
  // Predicated region
  $region26: #{basenet_forward.1} parent=0 // pred_check
    _
  $region27: #{basenet_forward.1} parent=0 // pred_check_branch
    %28 = sbr.rel (0) target = $region29
  $region28: #{basenet_forward.1} parent=0 // pred_region
    _
  $region29: #{basenet_forward.1} parent=0 // pred_fallthru
    _
  // Predicated region
  $region30: #{basenet_forward.1} parent=0 // pred_check
    _
  $region31: #{basenet_forward.1} parent=0 // pred_check_branch
    %30 = sbr.rel (0) target = $region33
  $region32: #{basenet_forward.1} parent=0 // pred_region
    _
  $region33: #{basenet_forward.1} parent=0 // pred_fallthru
    _
  // Predicated region
  $region34: #{basenet_forward.1} parent=0 // pred_check
    _
  $region35: #{basenet_forward.1} parent=0 // pred_check_branch
    %32 = sbr.rel (0) target = $region37
  $region36: #{basenet_forward.1} parent=0 // pred_region
    _
  $region37: #{basenet_forward.1} parent=0 // pred_fallthru
    _
  // Predicated region
  $region38: #{basenet_forward.1} parent=0 // pred_check
    _
  $region39: #{basenet_forward.1} parent=0 // pred_check_branch
    %34 = sbr.rel (0) target = $region41
  $region40: #{basenet_forward.1} parent=0 // pred_region
    _
  $region41: #{basenet_forward.1} parent=0 // pred_fallthru
    _
  %v36 = vld [vmem:[%s7] sm:$0xff]
  %v37 = vld [vmem:[%s0] sm:$0xf]
  %v38 = vld [vmem:[%s0 + $0x4] sm:$0xf]
  %v39 = vld [vmem:[%s1] sm:$0xf]
  %v40 = vld [vmem:[%s1 + $0x4] sm:$0xf]
  %v41 = vld [vmem:[%s1 + $0x8] sm:$0xf]
  %v42 = vld [vmem:[%s1 + $0xc] sm:$0xf]
  %v43 = vld [vmem:[%s1 + $0x10] sm:$0xf]
  %v44 = vld [vmem:[%s1 + $0x14] sm:$0xf]
  %v45 = vld [vmem:[%s1 + $0x18] sm:$0xf]
  %v46 = vld [vmem:[%s1 + $0x1c] sm:$0xf]
  %v47 = vlaneseq
  %v48 = vshrl.u32 %v47, 7
  %v49 = vsub.s32 0, %v48
  %v50 = vrot.slane %v36, %v49
  %v53 = vunpack.c.l.b16 %v37
  %v54 = vunpack.c.l.b16 %v38
  %v55 = vpack.c.b16 %v54, %v53
  %v64 = vunpack.c.l.b16 %v39
  %v65 = vunpack.c.l.b16 %v40
  %v66 = vunpack.c.l.b16 %v41
  %v67 = vunpack.c.l.b16 %v42
  %v68 = vunpack.c.l.b16 %v43
  %v69 = vunpack.c.l.b16 %v44
  %v70 = vunpack.c.l.b16 %v45
  %v71 = vunpack.c.l.b16 %v46
  %v72 = vpack.c.b16 %v65, %v64
  %v73 = vpack.c.b16 %v67, %v66
  %v74 = vpack.c.b16 %v69, %v68
  %v75 = vpack.c.b16 %v71, %v70
  %vm80 = vcmask 523264
  %v82 = vsel %vm80, %v55, 0
  %84 = vmatprep.subr.bf16.mxu0 0
  %85 = vmatpush1.bf16.msra.mxu0 %v72
  %86 = vmatprep.subr.bf16.mxu0 0
  %87 = vmatpush1.bf16.msra.mxu0 %v73
  %88 = vmatprep.subr.bf16.mxu0 0
  %89 = vmatpush1.bf16.msra.mxu0 %v74
  %90 = vmatprep.subr.bf16.mxu0 0
  %91 = vmatpush1.bf16.msra.mxu0 %v75
  %92 = vmatprep.subr.bf16.mxu0 0
  %93 = vmatpush1.bf16.msra.mxu0 0
  %94 = vmatprep.subr.bf16.mxu0 0
  %95 = vmatpush1.bf16.msra.mxu0 0
  %96 = vmatprep.subr.bf16.mxu0 0
  %97 = vmatpush1.bf16.msra.mxu0 0
  %98 = vmatprep.subr.bf16.mxu0 0
  %99 = vmatpush1.bf16.msra.mxu0 0
  %100 = vmatprep.subr.bf16.mxu0 0
  %101 = vmatpush1.bf16.msra.mxu0 0
  %102 = vmatprep.subr.bf16.mxu0 0
  %103 = vmatpush1.bf16.msra.mxu0 0
  %104 = vmatprep.subr.bf16.mxu0 0
  %105 = vmatpush1.bf16.msra.mxu0 0
  %106 = vmatprep.subr.bf16.mxu0 0
  %107 = vmatpush1.bf16.msra.mxu0 0
  %108 = vmatprep.subr.bf16.mxu0 0
  %109 = vmatpush1.bf16.msra.mxu0 0
  %110 = vmatprep.subr.bf16.mxu0 0
  %111 = vmatpush1.bf16.msra.mxu0 0
  %112 = vmatprep.subr.bf16.mxu0 0
  %113 = vmatpush1.bf16.msra.mxu0 0
  %114 = vmatprep.subr.bf16.mxu0 0
  %115 = vmatpush1.bf16.msra.mxu0 0
  %116 = vmatprep.mubr.bf16.mxu0 0
  %117 = vmatmul.mubr.bf16.gmra.mrb[0].mxu0 %v82
  %v118 = vpop.f32.mrb[0].mxu0
  %v119 = vadd.f32 %v50, %v118
  %v120 = vpop.f32.mrb[0].mxu0
  %v121 = vpop.f32.mrb[0].mxu0
  %v122 = vadd.f32 %v50, %v121
  %v123 = vpop.f32.mrb[0].mxu0
  %124 = vdwg.mxu0
  %v125 = vmax.f32 %v119, 0.0
  %v126 = vmax.f32 %v122, 0.0
  %v127 = vpack.c.bf16 %v126, %v125
  %v128 = vld [vmem:[%s2] sm:$0xf]
  %v129 = vld [vmem:[%s2 + $0x4] sm:$0xf]
  %v130 = vld [vmem:[%s2 + $0x8] sm:$0xf]
  %v131 = vld [vmem:[%s2 + $0xc] sm:$0xf]
  %v132 = vld [vmem:[%s2 + $0x10] sm:$0xf]
  %v133 = vld [vmem:[%s2 + $0x14] sm:$0xf]
  %v134 = vld [vmem:[%s2 + $0x18] sm:$0xf]
  %v135 = vld [vmem:[%s2 + $0x1c] sm:$0xf]
  %v136 = vld [vmem:[%s2 + $0x20] sm:$0xf]
  %v137 = vld [vmem:[%s2 + $0x24] sm:$0xf]
  %v138 = vld [vmem:[%s2 + $0x28] sm:$0xf]
  %v139 = vld [vmem:[%s2 + $0x2c] sm:$0xf]
  %v140 = vld [vmem:[%s2 + $0x30] sm:$0xf]
  %v141 = vld [vmem:[%s2 + $0x34] sm:$0xf]
  %v142 = vld [vmem:[%s2 + $0x38] sm:$0xf]
  %v143 = vld [vmem:[%s2 + $0x3c] sm:$0xf]
  %v144 = vlaneseq
  %v145 = vshrl.u32 %v144, 7
  %v146 = vsub.s32 1, %v145
  %v147 = vrot.slane %v36, %v146
  %v164 = vunpack.c.l.b16 %v128
  %v165 = vunpack.c.l.b16 %v129
  %v166 = vunpack.c.l.b16 %v130
  %v167 = vunpack.c.l.b16 %v131
  %v168 = vunpack.c.l.b16 %v132
  %v169 = vunpack.c.l.b16 %v133
  %v170 = vunpack.c.l.b16 %v134
  %v171 = vunpack.c.l.b16 %v135
  %v172 = vunpack.c.l.b16 %v136
  %v173 = vunpack.c.l.b16 %v137
  %v174 = vunpack.c.l.b16 %v138
  %v175 = vunpack.c.l.b16 %v139
  %v176 = vunpack.c.l.b16 %v140
  %v177 = vunpack.c.l.b16 %v141
  %v178 = vunpack.c.l.b16 %v142
  %v179 = vunpack.c.l.b16 %v143
  %v180 = vpack.c.b16 %v165, %v164
  %v181 = vpack.c.b16 %v167, %v166
  %v182 = vpack.c.b16 %v169, %v168
  %v183 = vpack.c.b16 %v171, %v170
  %v184 = vpack.c.b16 %v173, %v172
  %v185 = vpack.c.b16 %v175, %v174
  %v186 = vpack.c.b16 %v177, %v176
  %v187 = vpack.c.b16 %v179, %v178
  %196 = vmatprep.subr.bf16.mxu0 0
  %197 = vmatpush1.bf16.msra.mxu0 %v180
  %198 = vmatprep.subr.bf16.mxu0 0
  %199 = vmatpush1.bf16.msra.mxu0 %v181
  %200 = vmatprep.subr.bf16.mxu0 0
  %201 = vmatpush1.bf16.msra.mxu0 %v182
  %202 = vmatprep.subr.bf16.mxu0 0
  %203 = vmatpush1.bf16.msra.mxu0 %v183
  %204 = vmatprep.subr.bf16.mxu0 0
  %205 = vmatpush1.bf16.msra.mxu0 %v184
  %206 = vmatprep.subr.bf16.mxu0 0
  %207 = vmatpush1.bf16.msra.mxu0 %v185
  %208 = vmatprep.subr.bf16.mxu0 0
  %209 = vmatpush1.bf16.msra.mxu0 %v186
  %210 = vmatprep.subr.bf16.mxu0 0
  %211 = vmatpush1.bf16.msra.mxu0 %v187
  %212 = vmatprep.subr.bf16.mxu0 0
  %213 = vmatpush1.bf16.msra.mxu0 0
  %214 = vmatprep.subr.bf16.mxu0 0
  %215 = vmatpush1.bf16.msra.mxu0 0
  %216 = vmatprep.subr.bf16.mxu0 0
  %217 = vmatpush1.bf16.msra.mxu0 0
  %218 = vmatprep.subr.bf16.mxu0 0
  %219 = vmatpush1.bf16.msra.mxu0 0
  %220 = vmatprep.subr.bf16.mxu0 0
  %221 = vmatpush1.bf16.msra.mxu0 0
  %222 = vmatprep.subr.bf16.mxu0 0
  %223 = vmatpush1.bf16.msra.mxu0 0
  %224 = vmatprep.subr.bf16.mxu0 0
  %225 = vmatpush1.bf16.msra.mxu0 0
  %226 = vmatprep.subr.bf16.mxu0 0
  %227 = vmatpush1.bf16.msra.mxu0 0
  %228 = vmatprep.mubr.bf16.mxu0 0
  %229 = vmatmul.mubr.bf16.gmra.mrb[0].mxu0 %v127
  %v230 = vpop.f32.mrb[0].mxu0
  %v231 = vadd.f32 %v147, %v230
  %v232 = vpop.f32.mrb[0].mxu0
  %v233 = vpop.f32.mrb[0].mxu0
  %v234 = vadd.f32 %v147, %v233
  %v235 = vpop.f32.mrb[0].mxu0
  %236 = vdwg.mxu0
  %v237 = vmax.f32 %v231, 0.0
  %v238 = vmax.f32 %v234, 0.0
  %v239 = vpack.c.bf16 %v238, %v237
  %v240 = vld [vmem:[%s3] sm:$0xf]
  %v241 = vld [vmem:[%s3 + $0x4] sm:$0xf]
  %v242 = vld [vmem:[%s3 + $0x8] sm:$0xf]
  %v243 = vld [vmem:[%s3 + $0xc] sm:$0xf]
  %v244 = vld [vmem:[%s3 + $0x10] sm:$0xf]
  %v245 = vld [vmem:[%s3 + $0x14] sm:$0xf]
  %v246 = vld [vmem:[%s3 + $0x18] sm:$0xf]
  %v247 = vld [vmem:[%s3 + $0x1c] sm:$0xf]
  %v248 = vld [vmem:[%s3 + $0x20] sm:$0xf]
  %v249 = vld [vmem:[%s3 + $0x24] sm:$0xf]
  %v250 = vld [vmem:[%s3 + $0x28] sm:$0xf]
  %v251 = vld [vmem:[%s3 + $0x2c] sm:$0xf]
  %v252 = vld [vmem:[%s3 + $0x30] sm:$0xf]
  %v253 = vld [vmem:[%s3 + $0x34] sm:$0xf]
  %v254 = vld [vmem:[%s3 + $0x38] sm:$0xf]
  %v255 = vld [vmem:[%s3 + $0x3c] sm:$0xf]
  %v256 = vlaneseq
  %v257 = vshrl.u32 %v256, 7
  %v258 = vsub.s32 2, %v257
  %v259 = vrot.slane %v36, %v258
  %v276 = vunpack.c.l.b16 %v240
  %v277 = vunpack.c.l.b16 %v241
  %v278 = vunpack.c.l.b16 %v242
  %v279 = vunpack.c.l.b16 %v243
  %v280 = vunpack.c.l.b16 %v244
  %v281 = vunpack.c.l.b16 %v245
  %v282 = vunpack.c.l.b16 %v246
  %v283 = vunpack.c.l.b16 %v247
  %v284 = vunpack.c.l.b16 %v248
  %v285 = vunpack.c.l.b16 %v249
  %v286 = vunpack.c.l.b16 %v250
  %v287 = vunpack.c.l.b16 %v251
  %v288 = vunpack.c.l.b16 %v252
  %v289 = vunpack.c.l.b16 %v253
  %v290 = vunpack.c.l.b16 %v254
  %v291 = vunpack.c.l.b16 %v255
  %v292 = vpack.c.b16 %v277, %v276
  %v293 = vpack.c.b16 %v279, %v278
  %v294 = vpack.c.b16 %v281, %v280
  %v295 = vpack.c.b16 %v283, %v282
  %v296 = vpack.c.b16 %v285, %v284
  %v297 = vpack.c.b16 %v287, %v286
  %v298 = vpack.c.b16 %v289, %v288
  %v299 = vpack.c.b16 %v291, %v290
  %308 = vmatprep.subr.bf16.mxu0 0
  %309 = vmatpush1.bf16.msra.mxu0 %v292
  %310 = vmatprep.subr.bf16.mxu0 0
  %311 = vmatpush1.bf16.msra.mxu0 %v293
  %312 = vmatprep.subr.bf16.mxu0 0
  %313 = vmatpush1.bf16.msra.mxu0 %v294
  %314 = vmatprep.subr.bf16.mxu0 0
  %315 = vmatpush1.bf16.msra.mxu0 %v295
  %316 = vmatprep.subr.bf16.mxu0 0
  %317 = vmatpush1.bf16.msra.mxu0 %v296
  %318 = vmatprep.subr.bf16.mxu0 0
  %319 = vmatpush1.bf16.msra.mxu0 %v297
  %320 = vmatprep.subr.bf16.mxu0 0
  %321 = vmatpush1.bf16.msra.mxu0 %v298
  %322 = vmatprep.subr.bf16.mxu0 0
  %323 = vmatpush1.bf16.msra.mxu0 %v299
  %324 = vmatprep.subr.bf16.mxu0 0
  %325 = vmatpush1.bf16.msra.mxu0 0
  %326 = vmatprep.subr.bf16.mxu0 0
  %327 = vmatpush1.bf16.msra.mxu0 0
  %328 = vmatprep.subr.bf16.mxu0 0
  %329 = vmatpush1.bf16.msra.mxu0 0
  %330 = vmatprep.subr.bf16.mxu0 0
  %331 = vmatpush1.bf16.msra.mxu0 0
  %332 = vmatprep.subr.bf16.mxu0 0
  %333 = vmatpush1.bf16.msra.mxu0 0
  %334 = vmatprep.subr.bf16.mxu0 0
  %335 = vmatpush1.bf16.msra.mxu0 0
  %336 = vmatprep.subr.bf16.mxu0 0
  %337 = vmatpush1.bf16.msra.mxu0 0
  %338 = vmatprep.subr.bf16.mxu0 0
  %339 = vmatpush1.bf16.msra.mxu0 0
  %340 = vmatprep.mubr.bf16.mxu0 0
  %341 = vmatmul.mubr.bf16.gmra.mrb[0].mxu0 %v239
  %v342 = vpop.f32.mrb[0].mxu0
  %v343 = vadd.f32 %v259, %v342
  %v344 = vpop.f32.mrb[0].mxu0
  %v345 = vpop.f32.mrb[0].mxu0
  %v346 = vadd.f32 %v259, %v345
  %v347 = vpop.f32.mrb[0].mxu0
  %348 = vdwg.mxu0
  %v349 = vmax.f32 %v343, 0.0
  %v350 = vmax.f32 %v346, 0.0
  %v351 = vpack.c.bf16 %v350, %v349
  %v352 = vld [vmem:[%s4] sm:$0xf]
  %v353 = vld [vmem:[%s4 + $0x4] sm:$0xf]
  %v354 = vld [vmem:[%s4 + $0x8] sm:$0xf]
  %v355 = vld [vmem:[%s4 + $0xc] sm:$0xf]
  %v356 = vld [vmem:[%s4 + $0x10] sm:$0xf]
  %v357 = vld [vmem:[%s4 + $0x14] sm:$0xf]
  %v358 = vld [vmem:[%s4 + $0x18] sm:$0xf]
  %v359 = vld [vmem:[%s4 + $0x1c] sm:$0xf]
  %v360 = vld [vmem:[%s5] sm:$0xf]
  %v361 = vld [vmem:[%s5 + $0x4] sm:$0xf]
  %v362 = vld [vmem:[%s5 + $0x8] sm:$0xf]
  %v363 = vld [vmem:[%s5 + $0xc] sm:$0xf]
  %v364 = vld [vmem:[%s5 + $0x10] sm:$0xf]
  %v365 = vld [vmem:[%s5 + $0x14] sm:$0xf]
  %v366 = vld [vmem:[%s5 + $0x18] sm:$0xf]
  %v367 = vld [vmem:[%s5 + $0x1c] sm:$0xf]
  %v368 = vld [vmem:[%s5 + $0x20] sm:$0xf]
  %v369 = vld [vmem:[%s5 + $0x24] sm:$0xf]
  %v370 = vld [vmem:[%s5 + $0x28] sm:$0xf]
  %v371 = vld [vmem:[%s5 + $0x2c] sm:$0xf]
  %v372 = vld [vmem:[%s5 + $0x30] sm:$0xf]
  %v373 = vld [vmem:[%s5 + $0x34] sm:$0xf]
  %v374 = vld [vmem:[%s5 + $0x38] sm:$0xf]
  %v375 = vld [vmem:[%s5 + $0x3c] sm:$0xf]
  %v392 = vunpack.c.l.b16 %v360
  %v393 = vunpack.c.l.b16 %v361
  %v394 = vunpack.c.l.b16 %v362
  %v395 = vunpack.c.l.b16 %v363
  %v396 = vunpack.c.l.b16 %v364
  %v397 = vunpack.c.l.b16 %v365
  %v398 = vunpack.c.l.b16 %v366
  %v399 = vunpack.c.l.b16 %v367
  %v400 = vunpack.c.l.b16 %v368
  %v401 = vunpack.c.l.b16 %v369
  %v402 = vunpack.c.l.b16 %v370
  %v403 = vunpack.c.l.b16 %v371
  %v404 = vunpack.c.l.b16 %v372
  %v405 = vunpack.c.l.b16 %v373
  %v406 = vunpack.c.l.b16 %v374
  %v407 = vunpack.c.l.b16 %v375
  %v408 = vpack.c.b16 %v393, %v392
  %v409 = vpack.c.b16 %v395, %v394
  %v410 = vpack.c.b16 %v397, %v396
  %v411 = vpack.c.b16 %v399, %v398
  %v412 = vpack.c.b16 %v401, %v400
  %v413 = vpack.c.b16 %v403, %v402
  %v414 = vpack.c.b16 %v405, %v404
  %v415 = vpack.c.b16 %v407, %v406
  %424 = vmatprep.subr.bf16.mxu0 0
  %425 = vmatpush1.bf16.msra.mxu0 %v408
  %426 = vmatprep.subr.bf16.mxu0 0
  %427 = vmatpush1.bf16.msra.mxu0 %v409
  %428 = vmatprep.subr.bf16.mxu0 0
  %429 = vmatpush1.bf16.msra.mxu0 %v410
  %430 = vmatprep.subr.bf16.mxu0 0
  %431 = vmatpush1.bf16.msra.mxu0 %v411
  %432 = vmatprep.subr.bf16.mxu0 0
  %433 = vmatpush1.bf16.msra.mxu0 %v412
  %434 = vmatprep.subr.bf16.mxu0 0
  %435 = vmatpush1.bf16.msra.mxu0 %v413
  %436 = vmatprep.subr.bf16.mxu0 0
  %437 = vmatpush1.bf16.msra.mxu0 %v414
  %438 = vmatprep.subr.bf16.mxu0 0
  %439 = vmatpush1.bf16.msra.mxu0 %v415
  %440 = vmatprep.subr.bf16.mxu0 0
  %441 = vmatpush1.bf16.msra.mxu0 0
  %442 = vmatprep.subr.bf16.mxu0 0
  %443 = vmatpush1.bf16.msra.mxu0 0
  %444 = vmatprep.subr.bf16.mxu0 0
  %445 = vmatpush1.bf16.msra.mxu0 0
  %446 = vmatprep.subr.bf16.mxu0 0
  %447 = vmatpush1.bf16.msra.mxu0 0
  %448 = vmatprep.subr.bf16.mxu0 0
  %449 = vmatpush1.bf16.msra.mxu0 0
  %450 = vmatprep.subr.bf16.mxu0 0
  %451 = vmatpush1.bf16.msra.mxu0 0
  %452 = vmatprep.subr.bf16.mxu0 0
  %453 = vmatpush1.bf16.msra.mxu0 0
  %454 = vmatprep.subr.bf16.mxu0 0
  %455 = vmatpush1.bf16.msra.mxu0 0
  %456 = vmatprep.mubr.bf16.mxu0 0
  %457 = vmatmul.mubr.bf16.gmra.mrb[0].mxu0 %v239
  %v458 = vpop.f32.mrb[0].mxu0
  %v459 = vadd.f32 0.0, %v458
  %v460 = vpop.f32.mrb[0].mxu0
  %v461 = vpop.f32.mrb[0].mxu0
  %v462 = vadd.f32 0.0, %v461
  %v463 = vpop.f32.mrb[0].mxu0
  %464 = vdwg.mxu0
  %v473 = vunpack.c.l.b16 %v352
  %v474 = vunpack.c.l.b16 %v353
  %v475 = vunpack.c.l.b16 %v354
  %v476 = vunpack.c.l.b16 %v355
  %v477 = vunpack.c.l.b16 %v356
  %v478 = vunpack.c.l.b16 %v357
  %v479 = vunpack.c.l.b16 %v358
  %v480 = vunpack.c.l.b16 %v359
  %v481 = vpack.c.b16 %v474, %v473
  %v482 = vpack.c.b16 %v476, %v475
  %v483 = vpack.c.b16 %v478, %v477
  %v484 = vpack.c.b16 %v480, %v479
  %v490 = vsel %vm80, %v351, 0
  %492 = vmatprep.subr.bf16.mxu0 0
  %493 = vmatpush1.bf16.msra.mxu0 %v481
  %494 = vmatprep.subr.bf16.mxu0 0
  %495 = vmatpush1.bf16.msra.mxu0 %v482
  %496 = vmatprep.subr.bf16.mxu0 0
  %497 = vmatpush1.bf16.msra.mxu0 %v483
  %498 = vmatprep.subr.bf16.mxu0 0
  %499 = vmatpush1.bf16.msra.mxu0 %v484
  %500 = vmatprep.subr.bf16.mxu0 0
  %501 = vmatpush1.bf16.msra.mxu0 0
  %502 = vmatprep.subr.bf16.mxu0 0
  %503 = vmatpush1.bf16.msra.mxu0 0
  %504 = vmatprep.subr.bf16.mxu0 0
  %505 = vmatpush1.bf16.msra.mxu0 0
  %506 = vmatprep.subr.bf16.mxu0 0
  %507 = vmatpush1.bf16.msra.mxu0 0
  %508 = vmatprep.subr.bf16.mxu0 0
  %509 = vmatpush1.bf16.msra.mxu0 0
  %510 = vmatprep.subr.bf16.mxu0 0
  %511 = vmatpush1.bf16.msra.mxu0 0
  %512 = vmatprep.subr.bf16.mxu0 0
  %513 = vmatpush1.bf16.msra.mxu0 0
  %514 = vmatprep.subr.bf16.mxu0 0
  %515 = vmatpush1.bf16.msra.mxu0 0
  %516 = vmatprep.subr.bf16.mxu0 0
  %517 = vmatpush1.bf16.msra.mxu0 0
  %518 = vmatprep.subr.bf16.mxu0 0
  %519 = vmatpush1.bf16.msra.mxu0 0
  %520 = vmatprep.subr.bf16.mxu0 0
  %521 = vmatpush1.bf16.msra.mxu0 0
  %522 = vmatprep.subr.bf16.mxu0 0
  %523 = vmatpush1.bf16.msra.mxu0 0
  %524 = vmatprep.mubr.bf16.mxu0 0
  %525 = vmatmul.mubr.bf16.gmra.mrb[0].mxu0 %v490
  %v526 = vpop.f32.mrb[0].mxu0
  %v527 = vadd.f32 %v459, %v526
  %v528 = vpop.f32.mrb[0].mxu0
  %v529 = vpop.f32.mrb[0].mxu0
  %v530 = vadd.f32 %v462, %v529
  %v531 = vpop.f32.mrb[0].mxu0
  %532 = vdwg.mxu0
  %v533 = vlaneseq
  %v534 = vshrl.u32 %v533, 7
  %v535 = vsub.s32 3, %v534
  %v536 = vrot.slane %v36, %v535
  %v537 = vadd.f32 %v527, %v536
  %v538 = vadd.f32 %v530, %v536
  %v539 = vld [vmem:[%s8] sm:$0xff]
  %v540 = vld [vmem:[%s8 + $0x8] sm:$0xff]
  %v541 = vmul.f32 %v537, %v539
  %v542 = vmul.f32 %v538, %v540
  %v543 = vld [vmem:[%s9] sm:$0xff]
  %v544 = vld [vmem:[%s9 + $0x8] sm:$0xff]
  %v545 = vadd.f32 %v541, %v543
  %v546 = vadd.f32 %v542, %v544
  %v547 = vmax.f32 %v545, 0.0
  %v548 = vmax.f32 %v546, 0.0
  %v549 = vpack.c.bf16 %v548, %v547
  %v550 = vld [vmem:[%s6] sm:$0xf]
  %v551 = vld [vmem:[%s6 + $0x4] sm:$0xf]
  %v552 = vld [vmem:[%s6 + $0x8] sm:$0xf]
  %v553 = vld [vmem:[%s6 + $0xc] sm:$0xf]
  %v554 = vld [vmem:[%s6 + $0x10] sm:$0xf]
  %v555 = vld [vmem:[%s6 + $0x14] sm:$0xf]
  %v556 = vld [vmem:[%s6 + $0x18] sm:$0xf]
  %v557 = vld [vmem:[%s6 + $0x1c] sm:$0xf]
  %v558 = vld [vmem:[%s6 + $0x20] sm:$0xf]
  %v559 = vld [vmem:[%s6 + $0x24] sm:$0xf]
  %v560 = vld [vmem:[%s6 + $0x28] sm:$0xf]
  %v561 = vld [vmem:[%s6 + $0x2c] sm:$0xf]
  %v562 = vld [vmem:[%s6 + $0x30] sm:$0xf]
  %v563 = vld [vmem:[%s6 + $0x34] sm:$0xf]
  %v564 = vld [vmem:[%s6 + $0x38] sm:$0xf]
  %v565 = vld [vmem:[%s6 + $0x3c] sm:$0xf]
  %v566 = vlaneseq
  %v567 = vshrl.u32 %v566, 7
  %v568 = vsub.s32 4, %v567
  %v569 = vrot.slane %v36, %v568
  %v586 = vunpack.c.l.b16 %v550
  %v587 = vunpack.c.l.b16 %v551
  %v588 = vunpack.c.l.b16 %v552
  %v589 = vunpack.c.l.b16 %v553
  %v590 = vunpack.c.l.b16 %v554
  %v591 = vunpack.c.l.b16 %v555
  %v592 = vunpack.c.l.b16 %v556
  %v593 = vunpack.c.l.b16 %v557
  %v594 = vunpack.c.l.b16 %v558
  %v595 = vunpack.c.l.b16 %v559
  %v596 = vunpack.c.l.b16 %v560
  %v597 = vunpack.c.l.b16 %v561
  %v598 = vunpack.c.l.b16 %v562
  %v599 = vunpack.c.l.b16 %v563
  %v600 = vunpack.c.l.b16 %v564
  %v601 = vunpack.c.l.b16 %v565
  %v602 = vpack.c.b16 %v587, %v586
  %v603 = vpack.c.b16 %v589, %v588
  %v604 = vpack.c.b16 %v591, %v590
  %v605 = vpack.c.b16 %v593, %v592
  %v606 = vpack.c.b16 %v595, %v594
  %v607 = vpack.c.b16 %v597, %v596
  %v608 = vpack.c.b16 %v599, %v598
  %v609 = vpack.c.b16 %v601, %v600
  %618 = vmatprep.subr.bf16.mxu0 0
  %619 = vmatpush1.bf16.msra.mxu0 %v602
  %620 = vmatprep.subr.bf16.mxu0 0
  %621 = vmatpush1.bf16.msra.mxu0 %v603
  %622 = vmatprep.subr.bf16.mxu0 0
  %623 = vmatpush1.bf16.msra.mxu0 %v604
  %624 = vmatprep.subr.bf16.mxu0 0
  %625 = vmatpush1.bf16.msra.mxu0 %v605
  %626 = vmatprep.subr.bf16.mxu0 0
  %627 = vmatpush1.bf16.msra.mxu0 %v606
  %628 = vmatprep.subr.bf16.mxu0 0
  %629 = vmatpush1.bf16.msra.mxu0 %v607
  %630 = vmatprep.subr.bf16.mxu0 0
  %631 = vmatpush1.bf16.msra.mxu0 %v608
  %632 = vmatprep.subr.bf16.mxu0 0
  %633 = vmatpush1.bf16.msra.mxu0 %v609
  %634 = vmatprep.subr.bf16.mxu0 0
  %635 = vmatpush1.bf16.msra.mxu0 0
  %636 = vmatprep.subr.bf16.mxu0 0
  %637 = vmatpush1.bf16.msra.mxu0 0
  %638 = vmatprep.subr.bf16.mxu0 0
  %639 = vmatpush1.bf16.msra.mxu0 0
  %640 = vmatprep.subr.bf16.mxu0 0
  %641 = vmatpush1.bf16.msra.mxu0 0
  %642 = vmatprep.subr.bf16.mxu0 0
  %643 = vmatpush1.bf16.msra.mxu0 0
  %644 = vmatprep.subr.bf16.mxu0 0
  %645 = vmatpush1.bf16.msra.mxu0 0
  %646 = vmatprep.subr.bf16.mxu0 0
  %647 = vmatpush1.bf16.msra.mxu0 0
  %648 = vmatprep.subr.bf16.mxu0 0
  %649 = vmatpush1.bf16.msra.mxu0 0
  %650 = vmatprep.mubr.bf16.mxu0 0
  %651 = vmatmul.mubr.bf16.gmra.mrb[0].mxu0 %v549
  %v652 = vpop.f32.mrb[0].mxu0
  %v653 = vadd.f32 %v569, %v652
  %v654 = vpop.f32.mrb[0].mxu0
  %v655 = vpop.f32.mrb[0].mxu0
  %v656 = vadd.f32 %v569, %v655
  %v657 = vpop.f32.mrb[0].mxu0
  %658 = vdwg.mxu0
  %v659 = vxor.u32 %v653, 2147483648
  %v660 = vxor.u32 %v656, 2147483648
  %v661 = vmul.f32 %v659, 1.442695
  %v662 = vpow.pop %v661
  %v663 = vmul.f32 %v660, 1.442695
  %v664 = vpow.pop %v663
  %v665 = vadd.f32 %v662, 1.0
  %v666 = vadd.f32 %v664, 1.0
  %v667 = vrcp.pop %v665
  %v668 = vmul.f32 1.0, %v667
  %v669 = vrcp.pop %v666
  %v670 = vmul.f32 1.0, %v669
  %671 = vst [vmem:[%s10] sm:$0xff] %v668
  %672 = vst [vmem:[%s10 + $0x8] sm:$0xff] %v670
  // Predicated region
  $region42: #{basenet_forward.1} parent=0 // pred_check
    _
  $region43: #{basenet_forward.1} parent=0 // pred_check_branch
    %674 = sbr.rel (0) target = $region45
  $region44: #{basenet_forward.1} parent=0 // pred_region
    _
  $region45: #{basenet_forward.1} parent=0 // pred_fallthru
    _
  // Predicated region
  $region46: #{basenet_forward.1} parent=0 // pred_check
    _
  $region47: #{basenet_forward.1} parent=0 // pred_check_branch
    %676 = sbr.rel (0) target = $region49
  $region48: #{basenet_forward.1} parent=0 // pred_region
    _
  $region49: #{basenet_forward.1} parent=0 // pred_fallthru
    _

</llo_original>
